<compile_context>
chip_gen: v5e
topology: v5e:2x2
jax: 0.10.0
libtpu: 0.0.40
codegen_flags: <defaults>
</compile_context>

<pallas_src>
import jax
import jax.numpy as jnp
from jax.experimental import pallas as pl
from jax.experimental.pallas import tpu as pltpu

K = 3        # conv kernel size
STRIDE = 2
PAD = 1


def _conv1d_fold_kernel(x_ref, w_ref, b_ref, o_ref):
    # x_ref: (K*C_in, TL)   strided-tap slab for one (batch, L-tile)
    # w_ref: (C_out, K*C_in) folded weights (resident across the grid)
    # b_ref: (C_out, 1)      bias column (f32)
    # o_ref: (C_out, TL)     lane-dense output tile (writes straight into NCL output)
    acc = jnp.dot(w_ref[...], x_ref[...], preferred_element_type=jnp.float32)
    o_ref[...] = (acc + b_ref[...]).astype(o_ref.dtype)


def _choose_tl(l_out, c_in, c_out, itemsize, vmem_budget_bytes=20 * 1024 * 1024):
    """Largest lane-aligned L tile that keeps the double-buffered working set small."""
    if l_out <= 128:
        return l_out                      # full extent -> always a legal block shape
    # per grid step: 2x (x tile + out tile) for double buffering, + resident weights/bias
    fixed = 2 * (c_out * K * c_in + c_out) * itemsize
    per_col = 2 * (K * c_in + c_out) * itemsize
    tl = (vmem_budget_bytes - fixed) // per_col
    tl = max(128, (tl // 128) * 128)      # multiple of 128 (lane width)
    tl = min(tl, 2048, ((l_out + 127) // 128) * 128)
    return int(tl)


def downsample1d(x_ncl, weight, bias, *, compute_dtype=None):
    """Conv1d(dim, dim, 3, stride=2, padding=1).

    x_ncl:  (B, C, L)           -- PyTorch NCL layout
    weight: (C_out, C_in, K)    -- PyTorch Conv1d weight layout
    bias:   (C_out,)
    returns (B, C_out, L_out) with L_out = floor((L + 2*PAD - K)/STRIDE) + 1

    compute_dtype: optionally cast the matmul operands (e.g. jnp.bfloat16 on v5e/v6e/v7x
    for MXU peak); accumulation and bias add stay in f32.
    """
    B, C_in, L = x_ncl.shape
    C_out, C_in_w, K_w = weight.shape
    assert (C_in_w, K_w) == (C_in, K)
    L_out = (L + 2 * PAD - K) // STRIDE + 1

    dt = compute_dtype if compute_dtype is not None else x_ncl.dtype
    itemsize = jnp.dtype(dt).itemsize

    # ---- glue (plain JAX, NCL layout preserved): pad + gather the 3 strided taps ----
    x_pad = jnp.pad(x_ncl, ((0, 0), (0, 0), (PAD, PAD)))          # (B, C_in, L+2)
    lim = STRIDE * (L_out - 1) + 1
    taps = [
        jax.lax.slice(x_pad, (0, 0, k), (B, C_in, k + lim), (1, 1, STRIDE))
        for k in range(K)
    ]                                                             # each (B, C_in, L_out)
    x_taps = jnp.concatenate(taps, axis=1).astype(dt)             # (B, K*C_in, L_out)

    # w_fold[o, k*C_in + i] = weight[o, i, k]  (matches tap concatenation order)
    w_fold = jnp.transpose(weight, (0, 2, 1)).reshape(C_out, K * C_in).astype(dt)
    b_col = bias.reshape(C_out, 1).astype(jnp.float32)

    TL = _choose_tl(L_out, C_in, C_out, itemsize)
    grid = (B, pl.cdiv(L_out, TL))

    out_itemsize = jnp.dtype(x_ncl.dtype).itemsize
    cost = pl.CostEstimate(
        flops=2 * B * L_out * C_out * K * C_in,
        transcendentals=0,
        bytes_accessed=(x_taps.size * itemsize
                        + w_fold.size * itemsize
                        + C_out * 4
                        + B * C_out * L_out * out_itemsize),
    )

    out = pl.pallas_call(
        _conv1d_fold_kernel,
        out_shape=jax.ShapeDtypeStruct((B, C_out, L_out), x_ncl.dtype),
        grid_spec=pltpu.PrefetchScalarGridSpec(
            num_scalar_prefetch=0,
            grid=grid,
            in_specs=[
                pl.BlockSpec((None, K * C_in, TL), lambda b, l: (b, 0, l)),
                pl.BlockSpec((C_out, K * C_in), lambda b, l: (0, 0)),
                pl.BlockSpec((C_out, 1), lambda b, l: (0, 0)),
            ],
            out_specs=pl.BlockSpec((None, C_out, TL), lambda b, l: (b, 0, l)),
        ),
        compiler_params=pltpu.CompilerParams(
            dimension_semantics=("parallel", "parallel")),
        cost_estimate=cost,
    )(x_taps, w_fold, b_col)

    return out                                                    # (B, C_out, L_out)


if __name__ == "__main__":
    key = jax.random.PRNGKey(0)
    kx, kw, kb = jax.random.split(key, 3)

    B, dim, L = 2, 8, 16
    x = jax.random.normal(kx, (B, dim, L), dtype=jnp.float32)
    # deterministic synthetic parameters (PyTorch Conv1d weight shape: (dim, dim, 3))
    weight = 0.1 * jax.random.normal(kw, (dim, dim, K), dtype=jnp.float32)
    bias = 0.05 * jax.random.normal(kb, (dim,), dtype=jnp.float32)

    out = downsample1d(x, weight, bias)
    out = jax.block_until_ready(out)

    # reference check with XLA's conv (NCL / OIK layout), stride=2, pad=1
    ref = jax.lax.conv_general_dilated(
        x, weight, window_strides=(STRIDE,), padding=((PAD, PAD),),
        dimension_numbers=("NCH", "OIH", "NCH"),
    ) + bias[None, :, None]
    assert out.shape == (B, dim, (L + 2 * PAD - K) // STRIDE + 1)
    assert jnp.allclose(out, ref, atol=1e-4, rtol=1e-4)

    print("KERNEL_OK")
</pallas_src>

<mosaic_0001>
module attributes {stable_mosaic.version = 11 : i64} {
  func.func @_conv1d_fold_kernel(%arg0: i32, %arg1: i32, %arg2: memref<1x24x8xf32, #tpu.memory_space<vmem>>, %arg3: memref<8x24xf32, #tpu.memory_space<vmem>>, %arg4: memref<8x1xf32, #tpu.memory_space<vmem>>, %arg5: memref<1x8x8xf32, #tpu.memory_space<vmem>>) attributes {dimension_semantics = [#tpu.dimension_semantics<parallel>, #tpu.dimension_semantics<parallel>], iteration_bounds = array<i64: 2, 1>, scalar_prefetch = 0 : i64, scratch_operands = 0 : i64, tpu.core_type = #tpu.core_type<tc>, window_params = [{transform_indices = @transform_0, window_bounds = array<i64: 1, 24, 8>}, {pipeline_mode = #tpu.pipeline_mode<synchronous>, transform_indices = @transform_1, window_bounds = array<i64: 8, 24>}, {pipeline_mode = #tpu.pipeline_mode<synchronous>, transform_indices = @transform_2, window_bounds = array<i64: 8, 1>}, {transform_indices = @transform_3, window_bounds = array<i64: 1, 8, 8>}]} {
    %c0 = arith.constant 0 : index
    %c0_0 = arith.constant 0 : index
    %0 = vector.load %arg3[%c0, %c0_0] : memref<8x24xf32, #tpu.memory_space<vmem>>, vector<8x24xf32>
    %c0_1 = arith.constant 0 : index
    %c0_2 = arith.constant 0 : index
    %c0_3 = arith.constant 0 : index
    %1 = vector.load %arg2[%c0_1, %c0_2, %c0_3] : memref<1x24x8xf32, #tpu.memory_space<vmem>>, vector<1x24x8xf32>
    %2 = vector.shape_cast %1 : vector<1x24x8xf32> to vector<24x8xf32>
    %cst = arith.constant dense<0.000000e+00> : vector<8x8xf32>
    %3 = tpu.matmul %0, %2, %cst {dimension_numbers = #tpu.dot_dimension_numbers<[1], [0], [0], [1], [0, 0, 1, 1], [], []>} : vector<8x24xf32>, vector<24x8xf32>, vector<8x8xf32> -> vector<8x8xf32>
    %c0_4 = arith.constant 0 : index
    %c0_5 = arith.constant 0 : index
    %4 = vector.load %arg4[%c0_4, %c0_5] : memref<8x1xf32, #tpu.memory_space<vmem>>, vector<8x1xf32>
    %5 = vector.broadcast %4 : vector<8x1xf32> to vector<8x8xf32>
    %6 = arith.addf %3, %5 : vector<8x8xf32>
    %c0_6 = arith.constant 0 : index
    %c0_7 = arith.constant 0 : index
    %c0_8 = arith.constant 0 : index
    %7 = vector.load %arg5[%c0_6, %c0_7, %c0_8] : memref<1x8x8xf32, #tpu.memory_space<vmem>>, vector<1x8x8xf32>
    %8 = vector.shape_cast %7 : vector<1x8x8xf32> to vector<8x8xf32>
    %9 = vector.shape_cast %6 : vector<8x8xf32> to vector<1x8x8xf32>
    tpu.vector_store %arg5[%c0_6, %c0_7, %c0_8], %9 {strides = array<i32>} : memref<1x8x8xf32, #tpu.memory_space<vmem>>, vector<1x8x8xf32>,
    return
  }
  func.func @transform_0(%arg0: i32, %arg1: i32) -> (i32, i32, i32) {
    %c0_i32 = arith.constant 0 : i32
    %c0_i32_0 = arith.constant 0 : i32
    return %arg0, %c0_i32, %arg1 : i32, i32, i32
  }
  func.func @transform_1(%arg0: i32, %arg1: i32) -> (i32, i32) {
    %c0_i32 = arith.constant 0 : i32
    %c0_i32_0 = arith.constant 0 : i32
    %c0_i32_1 = arith.constant 0 : i32
    return %c0_i32, %c0_i32_0 : i32, i32
  }
  func.func @transform_2(%arg0: i32, %arg1: i32) -> (i32, i32) {
    %c0_i32 = arith.constant 0 : i32
    %c0_i32_0 = arith.constant 0 : i32
    %c0_i32_1 = arith.constant 0 : i32
    return %c0_i32, %c0_i32_0 : i32, i32
  }
  func.func @transform_3(%arg0: i32, %arg1: i32) -> (i32, i32, i32) {
    %c0_i32 = arith.constant 0 : i32
    %c0_i32_0 = arith.constant 0 : i32
    return %arg0, %c0_i32, %arg1 : i32, i32, i32
  }
}

</mosaic_0001>

<llo_original>
// kernel: tpu_custom_call.1
$region0: #{tpu_custom_call.1}
  #allocation0 [shape = 'u32[]', space=smem, size = 0x4, offset = 0x4, fixed_abs, tag = 'smem constant byte address 0x4 - core index']
  #allocation1 [shape = 'u32[72,128]{1,0:T(1,128)}', space=vmem, size = 0x9000, scoped, tag = 'internal scratch']
  %s0 = inlined_call_operand.vmem [shape: f32[2,24,8], index: 0, kind: input, shape index: {}]
  %s1 = inlined_call_operand.vmem [shape: f32[8,24], index: 1, kind: input, shape index: {}]
  %s2 = inlined_call_operand.vmem [shape: f32[8,1], index: 2, kind: input, shape index: {}]
  %s3 = inlined_call_operand.hbm [shape: f32[2,8,8], index: 3, kind: output, shape index: {}]
  %s4 = sld [smem:[#allocation0]]
  $region45: #{tpu_custom_call.1} parent=0
    _
  %s6 = ssub.s32 1, %s4
  %s7 = scalar_select 0, %s6, %s4
  $region1: #{tpu_custom_call.1} parent=0
    #allocation2 [shape = 'u8[8192]{0}', space=vmem, size = 0x2000, scoped, tag = 'output window, operand 0']
    #allocation3 [shape = 's32[2]{0}', space=sflag, size = 0x8, scoped, tag = 'scoped memory for tpu_custom_call.1']
    %8 = vsyncpa [#allocation3], 0
    %s9 = scalar_lea.sflag [#allocation3], 1
    %10 = vsyncpa %s9, 0
    loop: start=0, step=1, limit=4
    $region2: #{tpu_custom_call.1} parent=1 // loop_pre_header
      _
    $region3: #{tpu_custom_call.1} parent=1 // loop_header
      %s12 = sphi 0, %s16
      %p13 = scmp.ge.s32.totalorder %s12, 4
      %s19 = sphi 0, %s31
      %s20 = sphi 0, %s27
      %s21 = sphi 0, %s19
      %s22 = sphi 0, %s20
      %s23 = sphi 0, %s21
      %s24 = sphi 0, %s22
      %s36 = sphi 0, %s38
      %s39 = sphi 0, %s36
      %s40 = sphi 0, %s39
      %s56 = sphi 0, %s40
      %s60 = sphi 0, %s60
      %s62 = sphi 0, %s60
      %s63 = sphi 0, %s62
      %s77 = sphi 0, %s63
      %s81 = sphi 0, %s81
      %s83 = sphi 0, %s81
      %s84 = sphi 0, %s83
      %s98 = sphi 0, %s84
      %s106 = sphi 0, %s108
      %s109 = sphi 0, %s106
      %s110 = sphi 0, %s109
      %s126 = sphi 0, %s110
    $region4: #{tpu_custom_call.1} parent=1 // loop_header_branch
      %15 = sbr.rel (%p13) target = $region8
    $region5: #{tpu_custom_call.1} parent=1 // loop_body
      %s17 = ssub.s32 %s12, 1
      %s18 = ssub.s32 %s12, 2
      %s25 = sadd.s32 1, %s20
      %p26 = scmp.ge.s32.totalorder %s25, 1
      %s27 = scalar_select %p26, 0, %s25
      %s28 = sadd.s32 1, %s19
      %s29 = scalar_select %p26, %s28, %s19
      %p30 = scmp.ge.s32.totalorder %s29, 2
      %s31 = scalar_select %p30, 0, %s29
      %s32 = ssub.s32 %s19, %s31
      %s33 = ssub.s32 %s20, %s27
      %s34 = sor.u32 %s32, %s33
      %p35 = scmp.eq.s32.totalorder %s34, 0
      %s37 = sadd.s32 %s36, 1
      %s38 = scalar_select %p35, %s36, %s37
      %p41 = pneg %p35
      %p42 = scmp.eq.s32.totalorder %s12, 1
      %p43 = por %p41, %p42
      %p44 = scmp.ne.s32.totalorder %s36, %s39
      %p45 = scmp.eq.s32.totalorder %s12, 0
      %p46 = por %p44, %p45
      %p47 = scmp.ne.s32.totalorder %s36, %s39
      %p48 = scmp.eq.s32.totalorder %s17, 1
      %p49 = por %p47, %p48
      %p50 = scmp.ne.s32.totalorder %s39, %s40
      %p51 = scmp.eq.s32.totalorder %s17, 0
      %p52 = por %p50, %p51
      %p53 = scmp.ne.s32.totalorder %s39, %s40
      %p54 = scmp.eq.s32.totalorder %s18, 1
      %p55 = por %p53, %p54
      %p57 = scmp.ne.s32.totalorder %s40, %s56
      %p58 = scmp.eq.s32.totalorder %s18, 0
      %p59 = por %p57, %p58
      %s61 = sadd.s32 %s60, 1
      %p64 = scmp.eq.s32.totalorder %s12, 1
      %p65 = scmp.ne.s32.totalorder %s60, %s62
      %p66 = scmp.eq.s32.totalorder %s12, 0
      %p67 = por %p65, %p66
      %p68 = scmp.ne.s32.totalorder %s60, %s62
      %p69 = scmp.eq.s32.totalorder %s17, 1
      %p70 = por %p68, %p69
      %p71 = scmp.ne.s32.totalorder %s62, %s63
      %p72 = scmp.eq.s32.totalorder %s17, 0
      %p73 = por %p71, %p72
      %p74 = scmp.ne.s32.totalorder %s62, %s63
      %p75 = scmp.eq.s32.totalorder %s18, 1
      %p76 = por %p74, %p75
      %p78 = scmp.ne.s32.totalorder %s63, %s77
      %p79 = scmp.eq.s32.totalorder %s18, 0
      %p80 = por %p78, %p79
      %s82 = sadd.s32 %s81, 1
      %p85 = scmp.eq.s32.totalorder %s12, 1
      %p86 = scmp.ne.s32.totalorder %s81, %s83
      %p87 = scmp.eq.s32.totalorder %s12, 0
      %p88 = por %p86, %p87
      %p89 = scmp.ne.s32.totalorder %s81, %s83
      %p90 = scmp.eq.s32.totalorder %s17, 1
      %p91 = por %p89, %p90
      %p92 = scmp.ne.s32.totalorder %s83, %s84
      %p93 = scmp.eq.s32.totalorder %s17, 0
      %p94 = por %p92, %p93
      %p95 = scmp.ne.s32.totalorder %s83, %s84
      %p96 = scmp.eq.s32.totalorder %s18, 1
      %p97 = por %p95, %p96
      %p99 = scmp.ne.s32.totalorder %s84, %s98
      %p100 = scmp.eq.s32.totalorder %s18, 0
      %p101 = por %p99, %p100
      %s102 = ssub.s32 %s19, %s31
      %s103 = ssub.s32 %s20, %s27
      %s104 = sor.u32 %s102, %s103
      %p105 = scmp.eq.s32.totalorder %s104, 0
      %s107 = sadd.s32 %s106, 1
      %s108 = scalar_select %p105, %s106, %s107
      %p111 = pneg %p105
      %p112 = scmp.eq.s32.totalorder %s12, 1
      %p113 = por %p111, %p112
      %p114 = scmp.ne.s32.totalorder %s106, %s109
      %p115 = scmp.eq.s32.totalorder %s12, 0
      %p116 = por %p114, %p115
      %p117 = scmp.ne.s32.totalorder %s106, %s109
      %p118 = scmp.eq.s32.totalorder %s17, 1
      %p119 = por %p117, %p118
      %p120 = scmp.ne.s32.totalorder %s109, %s110
      %p121 = scmp.eq.s32.totalorder %s17, 0
      %p122 = por %p120, %p121
      %p123 = scmp.ne.s32.totalorder %s109, %s110
      %p124 = scmp.eq.s32.totalorder %s18, 1
      %p125 = por %p123, %p124
      %p127 = scmp.ne.s32.totalorder %s110, %s126
      %p128 = scmp.eq.s32.totalorder %s18, 0
      %p129 = por %p127, %p128
      %p130 = scmp.le.s32.totalorder 1, %s12
      %p131 = scmp.lt.s32.totalorder %s12, 3
      %p132 = pnand %p130, %p131
      %p133 = pneg %p132
      // Predicated region
      $region9: #{tpu_custom_call.1} parent=5 // pred_check
        _
      $region10: #{tpu_custom_call.1} parent=5 // pred_check_branch
        %135 = sbr.rel (%p132) target = $region12
      $region11: #{tpu_custom_call.1} parent=5 // pred_region
        %s136 = ssub.s32 %s12, 1
        // Predicated region
        $region13: #{tpu_custom_call.1} parent=11 // pred_check
          %p137 = pneg %p73
        $region14: #{tpu_custom_call.1} parent=11 // pred_check_branch
          %139 = sbr.rel (%p137) target = $region16
        $region15: #{tpu_custom_call.1} parent=11 // pred_region
          _
        $region16: #{tpu_custom_call.1} parent=11 // pred_fallthru
          _
        // Predicated region
        $region17: #{tpu_custom_call.1} parent=11 // pred_check
          %p140 = pneg %p94
        $region18: #{tpu_custom_call.1} parent=11 // pred_check_branch
          %142 = sbr.rel (%p140) target = $region20
        $region19: #{tpu_custom_call.1} parent=11 // pred_region
          _
        $region20: #{tpu_custom_call.1} parent=11 // pred_fallthru
          _
      $region12: #{tpu_custom_call.1} parent=5 // pred_fallthru
        _
      %p143 = scmp.lt.s32.totalorder %s12, 2
      // Predicated region
      $region21: #{tpu_custom_call.1} parent=5 // pred_check
        %p144 = pneg %p143
      $region22: #{tpu_custom_call.1} parent=5 // pred_check_branch
        %146 = sbr.rel (%p144) target = $region24
      $region23: #{tpu_custom_call.1} parent=5 // pred_region
        // Predicated region
        $region25: #{tpu_custom_call.1} parent=23 // pred_check
          %p147 = pneg %p46
        $region26: #{tpu_custom_call.1} parent=23 // pred_check_branch
          %149 = sbr.rel (%p147) target = $region28
        $region27: #{tpu_custom_call.1} parent=23 // pred_region
          %p150 = scmp.lt.s32.totalorder %s19, 1
          %s151 = scalar_select %p150, %s19, 1
          %p152 = scmp.lt.s32.totalorder %s20, 0
          %s153 = scalar_select %p152, %s20, 0
          %s154 = smul.addr %s151, 3
          %s155 = sadd.s32 %s153, %s154
          %s156 = smul.addr %s155, 8
          %s157 = scalar_lea.vmem %s0, %s156
        $region28: #{tpu_custom_call.1} parent=23 // pred_fallthru
          _
      $region24: #{tpu_custom_call.1} parent=5 // pred_fallthru
        _
      %p158 = scmp.le.s32.totalorder 1, %s12
      %p159 = scmp.lt.s32.totalorder %s12, 3
      %p160 = pnand %p158, %p159
      %p161 = pneg %p160
      // Predicated region
      $region29: #{tpu_custom_call.1} parent=5 // pred_check
        _
      $region30: #{tpu_custom_call.1} parent=5 // pred_check_branch
        %163 = sbr.rel (%p160) target = $region32
      $region31: #{tpu_custom_call.1} parent=5 // pred_region
        %s164 = ssub.s32 %s12, 1
        %p165 = scmp.lt.s32.totalorder %s21, 1
        %s166 = scalar_select %p165, %s21, 1
        %p167 = scmp.lt.s32.totalorder %s22, 0
        %s168 = scalar_select %p167, %s22, 0
        %s169 = smul.addr %s166, 3
        %s170 = sadd.s32 %s168, %s169
        %s171 = smul.addr %s170, 8
        %s172 = scalar_lea.vmem %s0, %s171
        %p173 = pneg %p52
        %p174 = pneg %p49
        %p175 = pneg %p73
        %p176 = pneg %p70
        %p177 = pneg %p94
        %p178 = pneg %p91
        %p179 = pneg %p122
        %p180 = pneg %p119
        %s181 = sand.u32 %s109, 1
        %s182 = scalar_lea.sflag [#allocation3], %s181
        %s183 = sand.u32 %s109, 1
        %s184 = smul.addr %s183, 8
        %s185 = scalar_lea.vmem [#allocation2], %s184
        %p186 = scmp.lt.s32.totalorder %s21, 1
        %s187 = scalar_select %p186, %s21, 1
        %p188 = scmp.lt.s32.totalorder %s22, 0
        %s189 = scalar_select %p188, %s22, 0
        %s190 = smul.addr %s187, 3
        %s191 = sadd.s32 %s189, %s190
        %s192 = smul.addr %s191, 8
        %s193 = scalar_lea.vmem %s0, %s192
        %v194 = vld [vmem:[%s1] sm:$0xff]
        %v195 = vld [vmem:[%s193] sm:$0xff]
        %v196 = vld [vmem:[%s193 + $0x8] sm:$0xff]
        %v197 = vld [vmem:[%s193 + $0x10] sm:$0xff]
        %v198 = vld [vmem:[%s2] sm:$0xff]
        %200 = vset.pattern.permute.xlu0 0
        %201 = vperm.xlu0 %200, %v198
        %v202 = vpop.permute.xlu0 %201
        %vm204 = vcmask 195584
        %v206 = vsel %vm204, %v194, 0
        %208 = vmatpush.msra.mxu0 0.0
        %209 = vmatpush.msra.mxu0 0.0
        %210 = vmatpush.msra.mxu0 0.0
        %211 = vmatpush.msra.mxu0 0.0
        %212 = vmatpush.msra.mxu0 0.0
        %213 = vmatpush.msra.mxu0 0.0
        %214 = vmatpush.msra.mxu0 0.0
        %215 = vmatpush.msra.mxu0 0.0
        %216 = vmatpush.msra.mxu0 0.0
        %217 = vmatpush.msra.mxu0 0.0
        %218 = vmatpush.msra.mxu0 0.0
        %219 = vmatpush.msra.mxu0 0.0
        %220 = vmatpush.msra.mxu0 0.0
        %221 = vmatpush.msra.mxu0 %v197
        %222 = vmatpush.msra.mxu0 %v196
        %223 = vmatpush.msra.mxu0 %v195
        %224 = vmatmul.f32.gmra.mxu0 %v206
        %v225 = vpop.f32.mrf.mxu0
        %v226 = vadd.f32 %v202, %v225
        %227 = vdwg.mxu0
        %vm228 = vcmask 64512
        %229 = vst.msk [vmem:[%s185] sm:$0xff] %vm228, %v226
        %s230 = sand.u32 %s109, 1
        %s231 = scalar_lea.sflag [#allocation3], %s230
        %s232 = sand.u32 %s109, 1
        %s233 = smul.addr %s232, 8
        %s234 = scalar_lea.vmem [#allocation2], %s233
        // Predicated region
        $region33: #{tpu_custom_call.1} parent=31 // pred_check
          %p235 = pneg %p119
        $region34: #{tpu_custom_call.1} parent=31 // pred_check_branch
          %237 = sbr.rel (%p235) target = $region36
        $region35: #{tpu_custom_call.1} parent=31 // pred_region
          %239 = vsyncadd %s231, 0
          %s240 = sadd.s32 %s22, %s21
          %s241 = smul.addr %s240, 8
          %s242 = scalar_lea.hbm %s3, %s241
          %s244 = sshll.u32 %s234, 4
          %s245 = int_to_ptr.vmem [resolvable:$true] %s244
          %s246 = sshll.u32 %s242, 4
          %s247 = int_to_ptr.hbm [resolvable:$true] %s246
          %249 = dma.vmem_to_hbm [thread:$0]  %s245, 128, %s247, %s231
        $region36: #{tpu_custom_call.1} parent=31 // pred_fallthru
          _
      $region32: #{tpu_custom_call.1} parent=5 // pred_fallthru
        _
      %p250 = scmp.le.s32.totalorder 2, %s12
      // Predicated region
      $region37: #{tpu_custom_call.1} parent=5 // pred_check
        %p251 = pneg %p250
      $region38: #{tpu_custom_call.1} parent=5 // pred_check_branch
        %253 = sbr.rel (%p251) target = $region40
      $region39: #{tpu_custom_call.1} parent=5 // pred_region
        %s254 = ssub.s32 %s12, 2
        // Predicated region
        $region41: #{tpu_custom_call.1} parent=39 // pred_check
          %p255 = pneg %p125
        $region42: #{tpu_custom_call.1} parent=39 // pred_check_branch
          %257 = sbr.rel (%p255) target = $region44
        $region43: #{tpu_custom_call.1} parent=39 // pred_region
          %s258 = sand.u32 %s110, 1
          %s259 = scalar_lea.sflag [#allocation3], %s258
          %s260 = sand.u32 %s110, 1
          %s261 = smul.addr %s260, 8
          %s262 = scalar_lea.vmem [#allocation2], %s261
          %264 = dma.done %s259, 128
        $region44: #{tpu_custom_call.1} parent=39 // pred_fallthru
          _
      $region40: #{tpu_custom_call.1} parent=5 // pred_fallthru
        _
    $region6: #{tpu_custom_call.1} parent=1 // loop_footer
      %s16 = sadd.s32 1, %s12
    $region7: #{tpu_custom_call.1} parent=1 // loop_footer_branch
      %11 = sbr.rel target = $region3
    $region8: #{tpu_custom_call.1} parent=1 // loop_exit
      _
    %265 = vsyncpa [#allocation3], 1
    %s266 = scalar_lea.sflag [#allocation3], 1
    %267 = vsyncpa %s266, 1

</llo_original>
